<compile_context>
chip_gen: v5e
topology: v5e:2x2
jax: 0.10.0
libtpu: 0.0.40
codegen_flags: <defaults>
</compile_context>

<pallas_src>
import jax
import jax.numpy as jnp
from jax.experimental import pallas as pl
from jax.experimental.pallas import tpu as pltpu


LANE = 128


# ---------------------------------------------------------------------------
# Helpers
# ---------------------------------------------------------------------------

def _round_up(x, m):
    return ((x + m - 1) // m) * m


def _pad2(a, rows, cols):
    return jnp.pad(a, ((0, rows - a.shape[0]), (0, cols - a.shape[1])))


def _vmem_limit_bytes():
    # Generation-aware budget: ~75% of physical VMEM, capped at 100 MiB.
    # -> ~48 MiB on v7x (64 MiB physical), ~96-100 MiB on v5e/v6e (128 MiB).
    cap = 64 * 1024 * 1024
    try:
        cap = int(getattr(pltpu.get_tpu_info(), "vmem_capacity_bytes", cap))
    except Exception:
        pass
    return min((cap * 3) // 4, 100 * 1024 * 1024)


# ---------------------------------------------------------------------------
# Kernels
# ---------------------------------------------------------------------------

def _fused_gcn_kernel(ahat_ref, x_ref, w1_ref, b1_ref, w2_ref, b2_ref,
                      pool_ref, wl1_ref, bl1_ref, wl2_ref, bl2_ref, out_ref):
    # Whole forward pass with Ahat resident in VMEM (single dispatch).
    f32, bf16 = jnp.float32, jnp.bfloat16
    # conv1: relu(Ahat @ (X @ W1) + b1)
    xw1 = jnp.dot(x_ref[...], w1_ref[...], preferred_element_type=f32).astype(bf16)
    h1 = jnp.maximum(
        jnp.dot(ahat_ref[...], xw1, preferred_element_type=f32) + b1_ref[...], 0.0)
    # conv2: relu(Ahat @ (H1 @ W2) + b2)
    xw2 = jnp.dot(h1.astype(bf16), w2_ref[...], preferred_element_type=f32).astype(bf16)
    h2 = jnp.maximum(
        jnp.dot(ahat_ref[...], xw2, preferred_element_type=f32) + b2_ref[...], 0.0)
    # head: global_mean_pool (matmul with precomputed pool matrix),
    # dropout(eval) = identity, lin1 + relu, lin2.
    pooled = jnp.dot(pool_ref[...], h2, preferred_element_type=f32)
    l1 = jnp.maximum(
        jnp.dot(pooled, wl1_ref[...], preferred_element_type=f32) + bl1_ref[...], 0.0)
    out_ref[...] = (jnp.dot(l1, wl2_ref[...], preferred_element_type=f32)
                    + bl2_ref[...])


def _proj_kernel(x_ref, w_ref, out_ref):
    # Hoisted projection: one row-tile of X @ W (computed once per layer).
    out_ref[...] = jnp.dot(
        x_ref[...], w_ref[...], preferred_element_type=jnp.float32
    ).astype(out_ref.dtype)


def _agg_rows_kernel(ahat_ref, xw_ref, b_ref, out_ref):
    # One row stripe of H = relu(Ahat @ XW + b).  Full-width contraction over
    # the node axis (no k grid axis, no accumulator scratch); XW uses a
    # constant block index so it is DMA'd from HBM exactly once and stays
    # VMEM-resident for all row tiles.
    acc = jnp.dot(ahat_ref[...], xw_ref[...], preferred_element_type=jnp.float32)
    out_ref[...] = jnp.maximum(acc + b_ref[...], 0.0).astype(out_ref.dtype)


def _head_kernel(pool_ref, h_ref, wl1_ref, bl1_ref, wl2_ref, bl2_ref, out_ref):
    # mean-pool as matmul, dropout(eval)=identity, lin1+relu, lin2.
    pooled = jnp.dot(pool_ref[...], h_ref[...].astype(jnp.float32),
                     preferred_element_type=jnp.float32)
    l1 = jnp.maximum(
        jnp.dot(pooled, wl1_ref[...], preferred_element_type=jnp.float32)
        + bl1_ref[...], 0.0)
    out_ref[...] = (jnp.dot(l1, wl2_ref[...], preferred_element_type=jnp.float32)
                    + bl2_ref[...])


# ---------------------------------------------------------------------------
# pallas_call wrappers
# ---------------------------------------------------------------------------

def _fused_forward(ahat_bf, x_bf, w1_bf, b1, w2_bf, b2,
                   pool, wl1, bl1, wl2, bl2, vmem_limit):
    g_pad = pool.shape[0]
    o_pad = wl2.shape[1]
    vmem = pl.BlockSpec(memory_space=pltpu.MemorySpace.VMEM)
    return pl.pallas_call(
        _fused_gcn_kernel,
        out_shape=jax.ShapeDtypeStruct((g_pad, o_pad), jnp.float32),
        in_specs=[vmem] * 11,
        out_specs=vmem,
        compiler_params=pltpu.CompilerParams(vmem_limit_bytes=vmem_limit),
    )(ahat_bf, x_bf, w1_bf, b1, w2_bf, b2, pool, wl1, bl1, wl2, bl2)


def _project(x_bf, w_bf, tm, vmem_limit):
    n, f = x_bf.shape
    h = w_bf.shape[1]
    return pl.pallas_call(
        _proj_kernel,
        out_shape=jax.ShapeDtypeStruct((n, h), jnp.bfloat16),
        grid_spec=pltpu.PrefetchScalarGridSpec(
            num_scalar_prefetch=0,
            grid=(n // tm,),
            in_specs=[pl.BlockSpec((tm, f), lambda i: (i, 0)),
                      pl.BlockSpec((f, h), lambda i: (0, 0))],
            out_specs=pl.BlockSpec((tm, h), lambda i: (i, 0)),
        ),
        compiler_params=pltpu.CompilerParams(
            dimension_semantics=("parallel",),
            vmem_limit_bytes=vmem_limit),
    )(x_bf, w_bf)


def _aggregate(ahat_bf, xw_bf, bias, tm, vmem_limit):
    n = ahat_bf.shape[0]
    h = xw_bf.shape[1]
    # XW is read once (resident), H emitted in bf16 -> accurate byte estimate.
    cost = pl.CostEstimate(
        flops=2 * n * n * h,
        transcendentals=0,
        bytes_accessed=n * n * 2 + n * h * 2 + n * h * 2 + h * 4)
    return pl.pallas_call(
        _agg_rows_kernel,
        out_shape=jax.ShapeDtypeStruct((n, h), jnp.bfloat16),
        grid_spec=pltpu.PrefetchScalarGridSpec(
            num_scalar_prefetch=0,
            grid=(n // tm,),
            in_specs=[pl.BlockSpec((tm, n), lambda i: (i, 0)),     # Ahat row stripe
                      pl.BlockSpec((n, h), lambda i: (0, 0)),      # XW, VMEM-resident
                      pl.BlockSpec((1, h), lambda i: (0, 0))],     # bias
            out_specs=pl.BlockSpec((tm, h), lambda i: (i, 0)),
        ),
        compiler_params=pltpu.CompilerParams(
            dimension_semantics=("parallel",),   # >=2 row tiles -> both v7x TCs busy
            vmem_limit_bytes=vmem_limit),
        cost_estimate=cost,
    )(ahat_bf, xw_bf, bias)


def _head(pool, h, wl1, bl1, wl2, bl2, vmem_limit):
    g = pool.shape[0]
    o = wl2.shape[1]
    vmem = pl.BlockSpec(memory_space=pltpu.MemorySpace.VMEM)
    return pl.pallas_call(
        _head_kernel,
        out_shape=jax.ShapeDtypeStruct((g, o), jnp.float32),
        in_specs=[vmem] * 6,
        out_specs=vmem,
        compiler_params=pltpu.CompilerParams(vmem_limit_bytes=vmem_limit),
    )(pool, h, wl1, bl1, wl2, bl2)


# ---------------------------------------------------------------------------
# Forward pass (padding glue + kernel calls)
# ---------------------------------------------------------------------------

def gcn_forward(ahat, x, w1, b1, w2, b2, pool, wl1, bl1, wl2, bl2,
                *, force_tiled=False, tm=None):
    n, in_feats = x.shape
    hidden = w1.shape[1]
    g = pool.shape[0]
    out_feats = wl2.shape[1]

    vmem_limit = _vmem_limit_bytes()

    h_pad = _round_up(hidden, LANE)      # lane-dense hidden width
    f_pad = _round_up(in_feats, LANE)    # lane-dense feature / lin1 width
    o_pad = _round_up(out_feats, LANE)   # lane-dense output width
    g_pad = _round_up(g, 8)

    # Row padding is decoupled from lane padding (multiple of 8 only), so
    # N=200 pads to 208 instead of 256.
    n_row_pad = _round_up(n, 8)

    # Fused single-call path when the resident working set fits VMEM.
    fused_bytes = 2 * n_row_pad * n_row_pad + 10 * 4 * n_row_pad * LANE
    use_fused = (not force_tiled) and fused_bytes < vmem_limit // 2

    if use_fused:
        n_pad = n_row_pad
    else:
        if tm is None:
            # Big stripes for large graphs, but always keep >=2 row tiles so
            # v7x's two TensorCores both get work.
            tm = 256 if n_row_pad >= 512 else max(8, _round_up((n_row_pad + 1) // 2, 8))
        n_pad = _round_up(n, tm)

    # Layout plumbing: zero padding once, in plain JAX, outside the kernels.
    # Invariant relied on for correctness: padded columns of pool_p and padded
    # rows of w2_bf / wl1_p are zero, so garbage rows/lanes from padded Ahat
    # rows never reach the output.
    ahat_bf = _pad2(ahat, n_pad, n_pad).astype(jnp.bfloat16)
    x_bf = _pad2(x, n_pad, f_pad).astype(jnp.bfloat16)
    w1_bf = _pad2(w1, f_pad, h_pad).astype(jnp.bfloat16)
    b1_p = _pad2(b1, 1, h_pad)
    w2_bf = _pad2(w2, h_pad, h_pad).astype(jnp.bfloat16)
    b2_p = _pad2(b2, 1, h_pad)
    pool_p = _pad2(pool, g_pad, n_pad)
    wl1_p = _pad2(wl1, h_pad, f_pad)
    bl1_p = _pad2(bl1, 1, f_pad)
    wl2_p = _pad2(wl2, f_pad, o_pad)
    bl2_p = _pad2(bl2, 1, o_pad)

    if use_fused:
        out_pad = _fused_forward(ahat_bf, x_bf, w1_bf, b1_p, w2_bf, b2_p,
                                 pool_p, wl1_p, bl1_p, wl2_p, bl2_p, vmem_limit)
    else:
        xw1 = _project(x_bf, w1_bf, tm, vmem_limit)          # X @ W1  (bf16)
        h1 = _aggregate(ahat_bf, xw1, b1_p, tm, vmem_limit)  # relu(Ahat@XW1+b1)
        xw2 = _project(h1, w2_bf, tm, vmem_limit)            # H1 @ W2 (bf16)
        h2 = _aggregate(ahat_bf, xw2, b2_p, tm, vmem_limit)  # relu(Ahat@XW2+b2)
        out_pad = _head(pool_p, h2, wl1_p, bl1_p, wl2_p, bl2_p, vmem_limit)

    return out_pad[:g, :out_feats]


# ---------------------------------------------------------------------------
# Glue: parameter init, dense normalized adjacency, mean-pool matrix
# ---------------------------------------------------------------------------

def xavier_uniform(key, fan_in, fan_out):
    limit = jnp.sqrt(6.0 / (fan_in + fan_out))
    return jax.random.uniform(key, (fan_in, fan_out), jnp.float32, -limit, limit)


def build_normalized_adj(n_nodes, edge_index, edge_weight):
    # A[dst, src] = w ; add self loops with weight 1 ; symmetric normalization.
    src, dst = edge_index[0], edge_index[1]
    A = jnp.zeros((n_nodes, n_nodes), jnp.float32).at[dst, src].add(edge_weight)
    A = A + jnp.eye(n_nodes, dtype=jnp.float32)
    deg = A.sum(axis=1)
    dinv = jnp.where(deg > 0, 1.0 / jnp.sqrt(deg), 0.0)
    return dinv[:, None] * A * dinv[None, :]


def build_mean_pool_matrix(batch, num_graphs):
    onehot = (batch[None, :] == jnp.arange(num_graphs)[:, None]).astype(jnp.float32)
    counts = jnp.maximum(onehot.sum(axis=1, keepdims=True), 1.0)
    return onehot / counts


if __name__ == "__main__":
    # Small but non-trivial shapes: 200 nodes (padded to 208), 2 graphs,
    # in_feats=8, hidden=32, out_feats=4, 600 edges.
    N, G = 200, 2
    in_feats, hidden, out_feats = 8, 32, 4
    E = 600

    key = jax.random.PRNGKey(0)
    k_x, k_src, k_dst, k_ew, k_w1, k_w2, k_l1, k_l2 = jax.random.split(key, 8)

    # Node features
    x = jax.random.normal(k_x, (N, in_feats), jnp.float32)

    # Random graph (edge_index [2, E], positive edge weights)
    src = jax.random.randint(k_src, (E,), 0, N)
    dst = jax.random.randint(k_dst, (E,), 0, N)
    edge_index = jnp.stack([src, dst], axis=0)
    edge_weight = jax.random.uniform(k_ew, (E,), jnp.float32, 0.1, 1.0)

    # batch assignment: first half -> graph 0, second half -> graph 1
    batch = jnp.concatenate([jnp.zeros(N // 2, jnp.int32),
                             jnp.ones(N - N // 2, jnp.int32)])

    # Parameters (xavier-uniform weights, zero biases, matching
    # initialize_weights in the reference module). Weights stored as [in, out].
    w1 = xavier_uniform(k_w1, in_feats, hidden)        # conv1.lin
    b1 = jnp.zeros((1, hidden), jnp.float32)
    w2 = xavier_uniform(k_w2, hidden, hidden)          # conv2.lin
    b2 = jnp.zeros((1, hidden), jnp.float32)
    wl1 = xavier_uniform(k_l1, hidden, in_feats)       # lin1 (transposed)
    bl1 = jnp.zeros((1, in_feats), jnp.float32)
    wl2 = xavier_uniform(k_l2, in_feats, out_feats)    # lin2 (transposed)
    bl2 = jnp.zeros((1, out_feats), jnp.float32)

    # Dense normalized adjacency and mean-pool matrix (plain JAX glue)
    ahat = build_normalized_adj(N, edge_index, edge_weight)
    pool = build_mean_pool_matrix(batch, G)

    # Pure-f32 JAX reference (bf16 MXU inputs in the kernel -> relaxed tol).
    h1 = jnp.maximum(ahat @ (x @ w1) + b1, 0.0)
    h2 = jnp.maximum(ahat @ (h1 @ w2) + b2, 0.0)
    ref = jnp.maximum(pool @ h2 @ wl1 + bl1, 0.0) @ wl2 + bl2

    # 1) fused single-call path (auto-selected at this size)
    out_fused = jax.block_until_ready(
        gcn_forward(ahat, x, w1, b1, w2, b2, pool, wl1, bl1, wl2, bl2))
    assert out_fused.shape == (G, out_feats)
    assert not jnp.isnan(out_fused).any()
    assert jnp.allclose(out_fused, ref, atol=5e-2, rtol=5e-2)

    # 2) tiled / pipelined path (used for large graphs) exercised at the same
    #    small shape to make sure it also compiles and matches.
    out_tiled = jax.block_until_ready(
        gcn_forward(ahat, x, w1, b1, w2, b2, pool, wl1, bl1, wl2, bl2,
                    force_tiled=True))
    assert out_tiled.shape == (G, out_feats)
    assert not jnp.isnan(out_tiled).any()
    assert jnp.allclose(out_tiled, ref, atol=5e-2, rtol=5e-2)

    print("KERNEL_OK")
</pallas_src>

<mosaic_0001>
module attributes {stable_mosaic.version = 11 : i64} {
  func.func @_fused_gcn_kernel(%arg0: memref<200x200xbf16, #tpu.memory_space<vmem>>, %arg1: memref<200x128xbf16, #tpu.memory_space<vmem>>, %arg2: memref<128x128xbf16, #tpu.memory_space<vmem>>, %arg3: memref<1x128xf32, #tpu.memory_space<vmem>>, %arg4: memref<128x128xbf16, #tpu.memory_space<vmem>>, %arg5: memref<1x128xf32, #tpu.memory_space<vmem>>, %arg6: memref<8x200xf32, #tpu.memory_space<vmem>>, %arg7: memref<128x128xf32, #tpu.memory_space<vmem>>, %arg8: memref<1x128xf32, #tpu.memory_space<vmem>>, %arg9: memref<128x128xf32, #tpu.memory_space<vmem>>, %arg10: memref<1x128xf32, #tpu.memory_space<vmem>>, %arg11: memref<8x128xf32, #tpu.memory_space<vmem>>) attributes {dimension_semantics = [], scalar_prefetch = 0 : i64, scratch_operands = 0 : i64, tpu.core_type = #tpu.core_type<tc>} {
    %c0 = arith.constant 0 : index
    %c0_0 = arith.constant 0 : index
    %0 = vector.load %arg1[%c0, %c0_0] : memref<200x128xbf16, #tpu.memory_space<vmem>>, vector<200x128xbf16>
    %c0_1 = arith.constant 0 : index
    %c0_2 = arith.constant 0 : index
    %1 = vector.load %arg2[%c0_1, %c0_2] : memref<128x128xbf16, #tpu.memory_space<vmem>>, vector<128x128xbf16>
    %cst = arith.constant dense<0.000000e+00> : vector<200x128xf32>
    %2 = tpu.matmul %0, %1, %cst {dimension_numbers = #tpu.dot_dimension_numbers<[1], [0], [0], [1], [0, 0, 1, 1], [], []>} : vector<200x128xbf16>, vector<128x128xbf16>, vector<200x128xf32> -> vector<200x128xf32>
    %3 = arith.truncf %2 : vector<200x128xf32> to vector<200x128xbf16>
    %c0_3 = arith.constant 0 : index
    %c0_4 = arith.constant 0 : index
    %4 = vector.load %arg0[%c0_3, %c0_4] : memref<200x200xbf16, #tpu.memory_space<vmem>>, vector<200x200xbf16>
    %cst_5 = arith.constant dense<0.000000e+00> : vector<200x128xf32>
    %5 = tpu.matmul %4, %3, %cst_5 {dimension_numbers = #tpu.dot_dimension_numbers<[1], [0], [0], [1], [0, 0, 1, 1], [], []>} : vector<200x200xbf16>, vector<200x128xbf16>, vector<200x128xf32> -> vector<200x128xf32>
    %c0_6 = arith.constant 0 : index
    %c0_7 = arith.constant 0 : index
    %6 = vector.load %arg3[%c0_6, %c0_7] : memref<1x128xf32, #tpu.memory_space<vmem>>, vector<1x128xf32>
    %7 = vector.broadcast %6 : vector<1x128xf32> to vector<200x128xf32>
    %8 = arith.addf %5, %7 : vector<200x128xf32>
    %cst_8 = arith.constant 0.000000e+00 : f32
    %9 = vector.broadcast %cst_8 : f32 to vector<200x128xf32>
    %10 = arith.maximumf %8, %9 : vector<200x128xf32>
    %11 = arith.truncf %10 : vector<200x128xf32> to vector<200x128xbf16>
    %c0_9 = arith.constant 0 : index
    %c0_10 = arith.constant 0 : index
    %12 = vector.load %arg4[%c0_9, %c0_10] : memref<128x128xbf16, #tpu.memory_space<vmem>>, vector<128x128xbf16>
    %cst_11 = arith.constant dense<0.000000e+00> : vector<200x128xf32>
    %13 = tpu.matmul %11, %12, %cst_11 {dimension_numbers = #tpu.dot_dimension_numbers<[1], [0], [0], [1], [0, 0, 1, 1], [], []>} : vector<200x128xbf16>, vector<128x128xbf16>, vector<200x128xf32> -> vector<200x128xf32>
    %14 = arith.truncf %13 : vector<200x128xf32> to vector<200x128xbf16>
    %c0_12 = arith.constant 0 : index
    %c0_13 = arith.constant 0 : index
    %15 = vector.load %arg0[%c0_12, %c0_13] : memref<200x200xbf16, #tpu.memory_space<vmem>>, vector<200x200xbf16>
    %cst_14 = arith.constant dense<0.000000e+00> : vector<200x128xf32>
    %16 = tpu.matmul %15, %14, %cst_14 {dimension_numbers = #tpu.dot_dimension_numbers<[1], [0], [0], [1], [0, 0, 1, 1], [], []>} : vector<200x200xbf16>, vector<200x128xbf16>, vector<200x128xf32> -> vector<200x128xf32>
    %c0_15 = arith.constant 0 : index
    %c0_16 = arith.constant 0 : index
    %17 = vector.load %arg5[%c0_15, %c0_16] : memref<1x128xf32, #tpu.memory_space<vmem>>, vector<1x128xf32>
    %18 = vector.broadcast %17 : vector<1x128xf32> to vector<200x128xf32>
    %19 = arith.addf %16, %18 : vector<200x128xf32>
    %cst_17 = arith.constant 0.000000e+00 : f32
    %20 = vector.broadcast %cst_17 : f32 to vector<200x128xf32>
    %21 = arith.maximumf %19, %20 : vector<200x128xf32>
    %c0_18 = arith.constant 0 : index
    %c0_19 = arith.constant 0 : index
    %22 = vector.load %arg6[%c0_18, %c0_19] : memref<8x200xf32, #tpu.memory_space<vmem>>, vector<8x200xf32>
    %cst_20 = arith.constant dense<0.000000e+00> : vector<8x128xf32>
    %23 = tpu.matmul %22, %21, %cst_20 {dimension_numbers = #tpu.dot_dimension_numbers<[1], [0], [0], [1], [0, 0, 1, 1], [], []>} : vector<8x200xf32>, vector<200x128xf32>, vector<8x128xf32> -> vector<8x128xf32>
    %c0_21 = arith.constant 0 : index
    %c0_22 = arith.constant 0 : index
    %24 = vector.load %arg7[%c0_21, %c0_22] : memref<128x128xf32, #tpu.memory_space<vmem>>, vector<128x128xf32>
    %cst_23 = arith.constant dense<0.000000e+00> : vector<8x128xf32>
    %25 = tpu.matmul %23, %24, %cst_23 {dimension_numbers = #tpu.dot_dimension_numbers<[1], [0], [0], [1], [0, 0, 1, 1], [], []>} : vector<8x128xf32>, vector<128x128xf32>, vector<8x128xf32> -> vector<8x128xf32>
    %c0_24 = arith.constant 0 : index
    %c0_25 = arith.constant 0 : index
    %26 = vector.load %arg8[%c0_24, %c0_25] : memref<1x128xf32, #tpu.memory_space<vmem>>, vector<1x128xf32>
    %27 = vector.broadcast %26 : vector<1x128xf32> to vector<8x128xf32>
    %28 = arith.addf %25, %27 : vector<8x128xf32>
    %cst_26 = arith.constant 0.000000e+00 : f32
    %29 = vector.broadcast %cst_26 : f32 to vector<8x128xf32>
    %30 = arith.maximumf %28, %29 : vector<8x128xf32>
    %c0_27 = arith.constant 0 : index
    %c0_28 = arith.constant 0 : index
    %31 = vector.load %arg9[%c0_27, %c0_28] : memref<128x128xf32, #tpu.memory_space<vmem>>, vector<128x128xf32>
    %cst_29 = arith.constant dense<0.000000e+00> : vector<8x128xf32>
    %32 = tpu.matmul %30, %31, %cst_29 {dimension_numbers = #tpu.dot_dimension_numbers<[1], [0], [0], [1], [0, 0, 1, 1], [], []>} : vector<8x128xf32>, vector<128x128xf32>, vector<8x128xf32> -> vector<8x128xf32>
    %c0_30 = arith.constant 0 : index
    %c0_31 = arith.constant 0 : index
    %33 = vector.load %arg10[%c0_30, %c0_31] : memref<1x128xf32, #tpu.memory_space<vmem>>, vector<1x128xf32>
    %34 = vector.broadcast %33 : vector<1x128xf32> to vector<8x128xf32>
    %35 = arith.addf %32, %34 : vector<8x128xf32>
    %c0_32 = arith.constant 0 : index
    %c0_33 = arith.constant 0 : index
    %36 = vector.load %arg11[%c0_32, %c0_33] : memref<8x128xf32, #tpu.memory_space<vmem>>, vector<8x128xf32>
    tpu.vector_store %arg11[%c0_32, %c0_33], %35 {strides = array<i32>} : memref<8x128xf32, #tpu.memory_space<vmem>>, vector<8x128xf32>,
    return
  }
}

</mosaic_0001>

<llo_original>
// kernel: tpu_custom_call.1
$region0: #{tpu_custom_call.1}
  #allocation0 [shape = 'u32[]', space=smem, size = 0x4, offset = 0x4, fixed_abs, tag = 'smem constant byte address 0x4 - core index']
  #allocation1 [shape = 'u32[72,128]{1,0:T(1,128)}', space=vmem, size = 0x9000, scoped, tag = 'internal scratch']
  %s0 = inlined_call_operand.hbm [shape: bf16[200,200], index: 0, kind: input, shape index: {}]
  %s1 = inlined_call_operand.hbm [shape: bf16[200,128], index: 1, kind: input, shape index: {}]
  %s2 = inlined_call_operand.hbm [shape: bf16[128,128], index: 2, kind: input, shape index: {}]
  %s3 = inlined_call_operand.vmem [shape: f32[1,128], index: 3, kind: input, shape index: {}]
  %s4 = inlined_call_operand.hbm [shape: bf16[128,128], index: 4, kind: input, shape index: {}]
  %s5 = inlined_call_operand.vmem [shape: f32[1,128], index: 5, kind: input, shape index: {}]
  %s6 = inlined_call_operand.hbm [shape: f32[8,200], index: 6, kind: input, shape index: {}]
  %s7 = inlined_call_operand.hbm [shape: f32[128,128], index: 7, kind: input, shape index: {}]
  %s8 = inlined_call_operand.vmem [shape: f32[1,128], index: 8, kind: input, shape index: {}]
  %s9 = inlined_call_operand.hbm [shape: f32[128,128], index: 9, kind: input, shape index: {}]
  %s10 = inlined_call_operand.vmem [shape: f32[1,128], index: 10, kind: input, shape index: {}]
  %s11 = inlined_call_operand.hbm [shape: f32[8,128], index: 11, kind: output, shape index: {}]
  %s12 = sld [smem:[#allocation0]]
  $region82: #{tpu_custom_call.1} parent=0
    _
  %s14 = ssub.s32 1, %s12
  %s15 = scalar_select 0, %s14, %s12
  $region1: #{tpu_custom_call.1} parent=0
    #allocation2 [shape = 'u8[102400]{0}', space=vmem, size = 0x19000, scoped, tag = 'input window, operand 0, single buffered']
    #allocation3 [shape = 's32[1]{0}', space=sflag, size = 0x4, scoped, tag = 'scoped memory for tpu_custom_call.1']
    #allocation4 [shape = 's32[1]{0}', space=sflag, size = 0x4, scoped, tag = 'scoped memory for tpu_custom_call.1']
    #allocation5 [shape = 'u8[51200]{0}', space=vmem, size = 0xc800, scoped, tag = 'input window, operand 1, single buffered']
    #allocation6 [shape = 's32[1]{0}', space=sflag, size = 0x4, scoped, tag = 'scoped memory for tpu_custom_call.1']
    #allocation7 [shape = 'u8[32768]{0}', space=vmem, size = 0x8000, scoped, tag = 'input window, operand 2, single buffered']
    #allocation8 [shape = 'u8[32768]{0}', space=vmem, size = 0x8000, scoped, tag = 'input window, operand 4, single buffered']
    #allocation9 [shape = 's32[1]{0}', space=sflag, size = 0x4, scoped, tag = 'scoped memory for tpu_custom_call.1']
    #allocation10 [shape = 'u8[8192]{0}', space=vmem, size = 0x2000, scoped, tag = 'input window, operand 6, single buffered']
    #allocation11 [shape = 'u8[65536]{0}', space=vmem, size = 0x10000, scoped, tag = 'input window, operand 7, single buffered']
    #allocation12 [shape = 's32[1]{0}', space=sflag, size = 0x4, scoped, tag = 'scoped memory for tpu_custom_call.1']
    #allocation13 [shape = 'u8[65536]{0}', space=vmem, size = 0x10000, scoped, tag = 'input window, operand 9, single buffered']
    #allocation14 [shape = 'u8[4096]{0}', space=vmem, size = 0x1000, scoped, tag = 'output window, operand 0, single buffered']
    %16 = vsyncpa [#allocation3], 0
    %17 = vsyncpa [#allocation6], 0
    %18 = vsyncpa [#allocation9], 0
    %19 = vsyncpa [#allocation12], 0
    %20 = vsyncpa [#allocation4], 0
    // Predicated region
    $region2: #{tpu_custom_call.1} parent=1 // pred_check
      _
    $region3: #{tpu_custom_call.1} parent=1 // pred_check_branch
      %22 = sbr.rel (0) target = $region5
    $region4: #{tpu_custom_call.1} parent=1 // pred_region
      %24 = vsyncadd [#allocation3], 0
      %s25 = sshll.u32 %s0, 4
      %s26 = int_to_ptr.hbm [resolvable:$true] %s25
      %s27 = sshll.u32 [#allocation2], 4
      %s28 = int_to_ptr.vmem [resolvable:$true] %s27
      %33 = dma.hbm_to_vmem [thread:$0]  %s26, 3200, %s28, [#allocation3], 128, 128, 8
    $region5: #{tpu_custom_call.1} parent=1 // pred_fallthru
      _
    // Predicated region
    $region6: #{tpu_custom_call.1} parent=1 // pred_check
      _
    $region7: #{tpu_custom_call.1} parent=1 // pred_check_branch
      %35 = sbr.rel (0) target = $region9
    $region8: #{tpu_custom_call.1} parent=1 // pred_region
      %37 = vsyncadd [#allocation6], 0
      %s38 = sshll.u32 %s1, 4
      %s39 = int_to_ptr.hbm [resolvable:$true] %s38
      %s40 = sshll.u32 [#allocation5], 4
      %s41 = int_to_ptr.vmem [resolvable:$true] %s40
      %46 = dma.hbm_to_vmem [thread:$0]  %s39, 1600, %s41, [#allocation6], 64, 64, 4
    $region9: #{tpu_custom_call.1} parent=1 // pred_fallthru
      _
    // Predicated region
    $region10: #{tpu_custom_call.1} parent=1 // pred_check
      _
    $region11: #{tpu_custom_call.1} parent=1 // pred_check_branch
      %48 = sbr.rel (0) target = $region13
    $region12: #{tpu_custom_call.1} parent=1 // pred_region
      %50 = vsyncadd [#allocation6], 0
      %s51 = sshll.u32 %s2, 4
      %s52 = int_to_ptr.hbm [resolvable:$true] %s51
      %s53 = sshll.u32 [#allocation7], 4
      %s54 = int_to_ptr.vmem [resolvable:$true] %s53
      %59 = dma.hbm_to_vmem [thread:$0]  %s52, 1024, %s54, [#allocation6], 64, 64, 4
    $region13: #{tpu_custom_call.1} parent=1 // pred_fallthru
      _
    // Predicated region
    $region14: #{tpu_custom_call.1} parent=1 // pred_check
      _
    $region15: #{tpu_custom_call.1} parent=1 // pred_check_branch
      %61 = sbr.rel (0) target = $region17
    $region16: #{tpu_custom_call.1} parent=1 // pred_region
      _
    $region17: #{tpu_custom_call.1} parent=1 // pred_fallthru
      _
    // Predicated region
    $region18: #{tpu_custom_call.1} parent=1 // pred_check
      _
    $region19: #{tpu_custom_call.1} parent=1 // pred_check_branch
      %63 = sbr.rel (0) target = $region21
    $region20: #{tpu_custom_call.1} parent=1 // pred_region
      %65 = vsyncadd [#allocation9], 0
      %s66 = sshll.u32 %s4, 4
      %s67 = int_to_ptr.hbm [resolvable:$true] %s66
      %s68 = sshll.u32 [#allocation8], 4
      %s69 = int_to_ptr.vmem [resolvable:$true] %s68
      %74 = dma.hbm_to_vmem [thread:$0]  %s67, 1024, %s69, [#allocation9], 64, 64, 4
    $region21: #{tpu_custom_call.1} parent=1 // pred_fallthru
      _
    // Predicated region
    $region22: #{tpu_custom_call.1} parent=1 // pred_check
      _
    $region23: #{tpu_custom_call.1} parent=1 // pred_check_branch
      %76 = sbr.rel (0) target = $region25
    $region24: #{tpu_custom_call.1} parent=1 // pred_region
      _
    $region25: #{tpu_custom_call.1} parent=1 // pred_fallthru
      _
    // Predicated region
    $region26: #{tpu_custom_call.1} parent=1 // pred_check
      _
    $region27: #{tpu_custom_call.1} parent=1 // pred_check_branch
      %78 = sbr.rel (0) target = $region29
    $region28: #{tpu_custom_call.1} parent=1 // pred_region
      %80 = vsyncadd [#allocation9], 0
      %s82 = sshll.u32 %s6, 4
      %s83 = int_to_ptr.hbm [resolvable:$true] %s82
      %s84 = sshll.u32 [#allocation10], 4
      %s85 = int_to_ptr.vmem [resolvable:$true] %s84
      %87 = dma.hbm_to_vmem [thread:$0]  %s83, 256, %s85, [#allocation9]
    $region29: #{tpu_custom_call.1} parent=1 // pred_fallthru
      _
    // Predicated region
    $region30: #{tpu_custom_call.1} parent=1 // pred_check
      _
    $region31: #{tpu_custom_call.1} parent=1 // pred_check_branch
      %89 = sbr.rel (0) target = $region33
    $region32: #{tpu_custom_call.1} parent=1 // pred_region
      %91 = vsyncadd [#allocation12], 0
      %s92 = sshll.u32 %s7, 4
      %s93 = int_to_ptr.hbm [resolvable:$true] %s92
      %s94 = sshll.u32 [#allocation11], 4
      %s95 = int_to_ptr.vmem [resolvable:$true] %s94
      %100 = dma.hbm_to_vmem [thread:$0]  %s93, 2048, %s95, [#allocation12], 128, 128, 8
    $region33: #{tpu_custom_call.1} parent=1 // pred_fallthru
      _
    // Predicated region
    $region34: #{tpu_custom_call.1} parent=1 // pred_check
      _
    $region35: #{tpu_custom_call.1} parent=1 // pred_check_branch
      %102 = sbr.rel (0) target = $region37
    $region36: #{tpu_custom_call.1} parent=1 // pred_region
      _
    $region37: #{tpu_custom_call.1} parent=1 // pred_fallthru
      _
    // Predicated region
    $region38: #{tpu_custom_call.1} parent=1 // pred_check
      _
    $region39: #{tpu_custom_call.1} parent=1 // pred_check_branch
      %104 = sbr.rel (0) target = $region41
    $region40: #{tpu_custom_call.1} parent=1 // pred_region
      %106 = vsyncadd [#allocation12], 0
      %s107 = sshll.u32 %s9, 4
      %s108 = int_to_ptr.hbm [resolvable:$true] %s107
      %s109 = sshll.u32 [#allocation13], 4
      %s110 = int_to_ptr.vmem [resolvable:$true] %s109
      %115 = dma.hbm_to_vmem [thread:$0]  %s108, 2048, %s110, [#allocation12], 128, 128, 8
    $region41: #{tpu_custom_call.1} parent=1 // pred_fallthru
      _
    // Predicated region
    $region42: #{tpu_custom_call.1} parent=1 // pred_check
      _
    $region43: #{tpu_custom_call.1} parent=1 // pred_check_branch
      %117 = sbr.rel (0) target = $region45
    $region44: #{tpu_custom_call.1} parent=1 // pred_region
      _
    $region45: #{tpu_custom_call.1} parent=1 // pred_fallthru
      _
    // Predicated region
    $region46: #{tpu_custom_call.1} parent=1 // pred_check
      _
    $region47: #{tpu_custom_call.1} parent=1 // pred_check_branch
      %119 = sbr.rel (0) target = $region49
    $region48: #{tpu_custom_call.1} parent=1 // pred_region
      %121 = dma.done [#allocation3], 3200
    $region49: #{tpu_custom_call.1} parent=1 // pred_fallthru
      _
    // Predicated region
    $region50: #{tpu_custom_call.1} parent=1 // pred_check
      _
    $region51: #{tpu_custom_call.1} parent=1 // pred_check_branch
      %123 = sbr.rel (0) target = $region53
    $region52: #{tpu_custom_call.1} parent=1 // pred_region
      %125 = dma.done [#allocation6], 1600
    $region53: #{tpu_custom_call.1} parent=1 // pred_fallthru
      _
    // Predicated region
    $region54: #{tpu_custom_call.1} parent=1 // pred_check
      _
    $region55: #{tpu_custom_call.1} parent=1 // pred_check_branch
      %127 = sbr.rel (0) target = $region57
    $region56: #{tpu_custom_call.1} parent=1 // pred_region
      %129 = dma.done [#allocation6], 1024
    $region57: #{tpu_custom_call.1} parent=1 // pred_fallthru
      _
    // Predicated region
    $region58: #{tpu_custom_call.1} parent=1 // pred_check
      _
    $region59: #{tpu_custom_call.1} parent=1 // pred_check_branch
      %131 = sbr.rel (0) target = $region61
    $region60: #{tpu_custom_call.1} parent=1 // pred_region
      %133 = dma.done [#allocation9], 1024
    $region61: #{tpu_custom_call.1} parent=1 // pred_fallthru
      _
    // Predicated region
    $region62: #{tpu_custom_call.1} parent=1 // pred_check
      _
    $region63: #{tpu_custom_call.1} parent=1 // pred_check_branch
      %135 = sbr.rel (0) target = $region65
    $region64: #{tpu_custom_call.1} parent=1 // pred_region
      %137 = dma.done [#allocation9], 256
    $region65: #{tpu_custom_call.1} parent=1 // pred_fallthru
      _
    // Predicated region
    $region66: #{tpu_custom_call.1} parent=1 // pred_check
      _
    $region67: #{tpu_custom_call.1} parent=1 // pred_check_branch
      %139 = sbr.rel (0) target = $region69
    $region68: #{tpu_custom_call.1} parent=1 // pred_region
      %141 = dma.done [#allocation12], 2048
    $region69: #{tpu_custom_call.1} parent=1 // pred_fallthru
      _
    // Predicated region
    $region70: #{tpu_custom_call.1} parent=1 // pred_check
      _
    $region71: #{tpu_custom_call.1} parent=1 // pred_check_branch
      %143 = sbr.rel (0) target = $region73
    $region72: #{tpu_custom_call.1} parent=1 // pred_region
      %145 = dma.done [#allocation12], 2048
    $region73: #{tpu_custom_call.1} parent=1 // pred_fallthru
      _
    %v147 = vld [vmem:[#allocation5] sm:$0xf]
    %v148 = vld [vmem:[#allocation5 + $0x4] sm:$0xf]
    %v149 = vld [vmem:[#allocation5 + $0x8] sm:$0xf]
    %v150 = vld [vmem:[#allocation5 + $0xc] sm:$0xf]
    %v151 = vld [vmem:[#allocation5 + $0x10] sm:$0xf]
    %v152 = vld [vmem:[#allocation5 + $0x14] sm:$0xf]
    %v153 = vld [vmem:[#allocation5 + $0x18] sm:$0xf]
    %v154 = vld [vmem:[#allocation5 + $0x1c] sm:$0xf]
    %v155 = vld [vmem:[#allocation5 + $0x20] sm:$0xf]
    %v156 = vld [vmem:[#allocation5 + $0x24] sm:$0xf]
    %v157 = vld [vmem:[#allocation5 + $0x28] sm:$0xf]
    %v158 = vld [vmem:[#allocation5 + $0x2c] sm:$0xf]
    %v159 = vld [vmem:[#allocation5 + $0x30] sm:$0xf]
    %v160 = vld [vmem:[#allocation5 + $0x34] sm:$0xf]
    %v161 = vld [vmem:[#allocation5 + $0x38] sm:$0xf]
    %v162 = vld [vmem:[#allocation5 + $0x3c] sm:$0xf]
    %v163 = vld [vmem:[#allocation5 + $0x40] sm:$0xf]
    %v164 = vld [vmem:[#allocation5 + $0x44] sm:$0xf]
    %v165 = vld [vmem:[#allocation5 + $0x48] sm:$0xf]
    %v166 = vld [vmem:[#allocation5 + $0x4c] sm:$0xf]
    %v167 = vld [vmem:[#allocation5 + $0x50] sm:$0xf]
    %v168 = vld [vmem:[#allocation5 + $0x54] sm:$0xf]
    %v169 = vld [vmem:[#allocation5 + $0x58] sm:$0xf]
    %v170 = vld [vmem:[#allocation5 + $0x5c] sm:$0xf]
    %v171 = vld [vmem:[#allocation5 + $0x60] sm:$0xf]
    %v172 = vld [vmem:[#allocation7] sm:$0xf]
    %v173 = vld [vmem:[#allocation7 + $0x4] sm:$0xf]
    %v174 = vld [vmem:[#allocation7 + $0x8] sm:$0xf]
    %v175 = vld [vmem:[#allocation7 + $0xc] sm:$0xf]
    %v176 = vld [vmem:[#allocation7 + $0x10] sm:$0xf]
    %v177 = vld [vmem:[#allocation7 + $0x14] sm:$0xf]
    %v178 = vld [vmem:[#allocation7 + $0x18] sm:$0xf]
    %v179 = vld [vmem:[#allocation7 + $0x1c] sm:$0xf]
    %v180 = vld [vmem:[#allocation7 + $0x20] sm:$0xf]
    %v181 = vld [vmem:[#allocation7 + $0x24] sm:$0xf]
    %v182 = vld [vmem:[#allocation7 + $0x28] sm:$0xf]
    %v183 = vld [vmem:[#allocation7 + $0x2c] sm:$0xf]
    %v184 = vld [vmem:[#allocation7 + $0x30] sm:$0xf]
    %v185 = vld [vmem:[#allocation7 + $0x34] sm:$0xf]
    %v186 = vld [vmem:[#allocation7 + $0x38] sm:$0xf]
    %v187 = vld [vmem:[#allocation7 + $0x3c] sm:$0xf]
    %v213 = vunpack.c.l.b16 %v147
    %v214 = vunpack.c.l.b16 %v148
    %v215 = vunpack.c.l.b16 %v149
    %v216 = vunpack.c.l.b16 %v150
    %v217 = vunpack.c.l.b16 %v151
    %v218 = vunpack.c.l.b16 %v152
    %v219 = vunpack.c.l.b16 %v153
    %v220 = vunpack.c.l.b16 %v154
    %v221 = vunpack.c.l.b16 %v155
    %v222 = vunpack.c.l.b16 %v156
    %v223 = vunpack.c.l.b16 %v157
    %v224 = vunpack.c.l.b16 %v158
    %v225 = vunpack.c.l.b16 %v159
    %v226 = vunpack.c.l.b16 %v160
    %v227 = vunpack.c.l.b16 %v161
    %v228 = vunpack.c.l.b16 %v162
    %v229 = vunpack.c.l.b16 %v163
    %v230 = vunpack.c.l.b16 %v164
    %v231 = vunpack.c.l.b16 %v165
    %v232 = vunpack.c.l.b16 %v166
    %v233 = vunpack.c.l.b16 %v167
    %v234 = vunpack.c.l.b16 %v168
    %v235 = vunpack.c.l.b16 %v169
    %v236 = vunpack.c.l.b16 %v170
    %v237 = vunpack.c.l.b16 %v171
    %v238 = vpack.c.b16 %v214, %v213
    %v239 = vpack.c.b16 %v216, %v215
    %v240 = vpack.c.b16 %v218, %v217
    %v241 = vpack.c.b16 %v220, %v219
    %v242 = vpack.c.b16 %v222, %v221
    %v243 = vpack.c.b16 %v224, %v223
    %v244 = vpack.c.b16 %v226, %v225
    %v245 = vpack.c.b16 %v228, %v227
    %v246 = vpack.c.b16 %v230, %v229
    %v247 = vpack.c.b16 %v232, %v231
    %v248 = vpack.c.b16 %v234, %v233
    %v249 = vpack.c.b16 %v236, %v235
    %v250 = vpack.c.b16 %v237, %v237
    %v280 = vunpack.c.l.b16 %v172
    %v281 = vunpack.c.l.b16 %v173
    %v282 = vunpack.c.l.b16 %v174
    %v283 = vunpack.c.l.b16 %v175
    %v284 = vunpack.c.l.b16 %v176
    %v285 = vunpack.c.l.b16 %v177
    %v286 = vunpack.c.l.b16 %v178
    %v287 = vunpack.c.l.b16 %v179
    %v288 = vunpack.c.l.b16 %v180
    %v289 = vunpack.c.l.b16 %v181
    %v290 = vunpack.c.l.b16 %v182
    %v291 = vunpack.c.l.b16 %v183
    %v292 = vunpack.c.l.b16 %v184
    %v293 = vunpack.c.l.b16 %v185
    %v294 = vunpack.c.l.b16 %v186
    %v295 = vunpack.c.l.b16 %v187
    %v296 = vpack.c.b16 %v281, %v280
    %v297 = vpack.c.b16 %v283, %v282
    %v298 = vpack.c.b16 %v285, %v284
    %v299 = vpack.c.b16 %v287, %v286
    %v300 = vpack.c.b16 %v289, %v288
    %v301 = vpack.c.b16 %v291, %v290
    %v302 = vpack.c.b16 %v293, %v292
    %v303 = vpack.c.b16 %v295, %v294
    %312 = vmatpush.bf16.msra.mxu0 %v303
    %313 = vmatpush.bf16.msra.mxu0 %v302
    %314 = vmatpush.bf16.msra.mxu0 %v301
    %315 = vmatpush.bf16.msra.mxu0 %v300
    %316 = vmatpush.bf16.msra.mxu0 %v299
    %317 = vmatpush.bf16.msra.mxu0 %v298
    %318 = vmatpush.bf16.msra.mxu0 %v297
    %319 = vmatpush.bf16.msra.mxu0 %v296
    %320 = vmatmul.bf16.gmra.mxu0 %v238
    %v321 = vpop.f32.mrf.mxu0
    %v322 = vadd.f32 0.0, %v321
    %v323 = vpop.f32.mrf.mxu0
    %v324 = vadd.f32 0.0, %v323
    %325 = vmatmul.bf16.gmra.mxu0 %v239
    %v326 = vpop.f32.mrf.mxu0
    %v327 = vadd.f32 0.0, %v326
    %v328 = vpop.f32.mrf.mxu0
    %v329 = vadd.f32 0.0, %v328
    %330 = vmatmul.bf16.gmra.mxu0 %v240
    %v331 = vpop.f32.mrf.mxu0
    %v332 = vadd.f32 0.0, %v331
    %v333 = vpop.f32.mrf.mxu0
    %v334 = vadd.f32 0.0, %v333
    %335 = vmatmul.bf16.gmra.mxu0 %v241
    %v336 = vpop.f32.mrf.mxu0
    %v337 = vadd.f32 0.0, %v336
    %v338 = vpop.f32.mrf.mxu0
    %v339 = vadd.f32 0.0, %v338
    %340 = vmatmul.bf16.gmra.mxu0 %v242
    %v341 = vpop.f32.mrf.mxu0
    %v342 = vadd.f32 0.0, %v341
    %v343 = vpop.f32.mrf.mxu0
    %v344 = vadd.f32 0.0, %v343
    %345 = vmatmul.bf16.gmra.mxu0 %v243
    %v346 = vpop.f32.mrf.mxu0
    %v347 = vadd.f32 0.0, %v346
    %v348 = vpop.f32.mrf.mxu0
    %v349 = vadd.f32 0.0, %v348
    %350 = vmatmul.bf16.gmra.mxu0 %v244
    %v351 = vpop.f32.mrf.mxu0
    %v352 = vadd.f32 0.0, %v351
    %v353 = vpop.f32.mrf.mxu0
    %v354 = vadd.f32 0.0, %v353
    %355 = vmatmul.bf16.gmra.mxu0 %v245
    %v356 = vpop.f32.mrf.mxu0
    %v357 = vadd.f32 0.0, %v356
    %v358 = vpop.f32.mrf.mxu0
    %v359 = vadd.f32 0.0, %v358
    %360 = vmatmul.bf16.gmra.mxu0 %v246
    %v361 = vpop.f32.mrf.mxu0
    %v362 = vadd.f32 0.0, %v361
    %v363 = vpop.f32.mrf.mxu0
    %v364 = vadd.f32 0.0, %v363
    %365 = vmatmul.bf16.gmra.mxu0 %v247
    %v366 = vpop.f32.mrf.mxu0
    %v367 = vadd.f32 0.0, %v366
    %v368 = vpop.f32.mrf.mxu0
    %v369 = vadd.f32 0.0, %v368
    %370 = vmatmul.bf16.gmra.mxu0 %v248
    %v371 = vpop.f32.mrf.mxu0
    %v372 = vadd.f32 0.0, %v371
    %v373 = vpop.f32.mrf.mxu0
    %v374 = vadd.f32 0.0, %v373
    %375 = vmatmul.bf16.gmra.mxu0 %v249
    %v376 = vpop.f32.mrf.mxu0
    %v377 = vadd.f32 0.0, %v376
    %v378 = vpop.f32.mrf.mxu0
    %v379 = vadd.f32 0.0, %v378
    %380 = vmatmul.bf16.gmra.mxu0 %v250
    %v381 = vpop.f32.mrf.mxu0
    %v382 = vadd.f32 0.0, %v381
    %v383 = vpop.f32.mrf.mxu0
    %384 = vdwg.mxu0
    %v385 = vpack.c.bf16 %v324, %v322
    %v386 = vpack.c.bf16 %v329, %v327
    %v387 = vpack.c.bf16 %v334, %v332
    %v388 = vpack.c.bf16 %v339, %v337
    %v389 = vpack.c.bf16 %v344, %v342
    %v390 = vpack.c.bf16 %v349, %v347
    %v391 = vpack.c.bf16 %v354, %v352
    %v392 = vpack.c.bf16 %v359, %v357
    %v393 = vpack.c.bf16 %v364, %v362
    %v394 = vpack.c.bf16 %v369, %v367
    %v395 = vpack.c.bf16 %v374, %v372
    %v396 = vpack.c.bf16 %v379, %v377
    %v397 = vpack.c.bf16 %v382, %v382
    %v398 = vld [vmem:[#allocation2] sm:$0xff]
    %v399 = vld [vmem:[#allocation2 + $0x8] sm:$0xff]
    %v400 = vld [vmem:[#allocation2 + $0x10] sm:$0xff]
    %v401 = vld [vmem:[#allocation2 + $0x18] sm:$0xff]
    %v402 = vld [vmem:[#allocation2 + $0x20] sm:$0xff]
    %v403 = vld [vmem:[#allocation2 + $0x28] sm:$0xff]
    %v404 = vld [vmem:[#allocation2 + $0x30] sm:$0xff]
    %v405 = vld [vmem:[#allocation2 + $0x38] sm:$0xff]
    %v406 = vld [vmem:[#allocation2 + $0x40] sm:$0xff]
    %v407 = vld [vmem:[#allocation2 + $0x48] sm:$0xff]
    %v408 = vld [vmem:[#allocation2 + $0x50] sm:$0xff]
    %v409 = vld [vmem:[#allocation2 + $0x58] sm:$0xff]
    %v410 = vld [vmem:[#allocation2 + $0x60] sm:$0xff]
    %v411 = vld [vmem:[#allocation2 + $0x68] sm:$0xff]
    %v412 = vld [vmem:[#allocation2 + $0x70] sm:$0xff]
    %v413 = vld [vmem:[#allocation2 + $0x78] sm:$0xff]
    %v414 = vld [vmem:[#allocation2 + $0x80] sm:$0xff]
    %v415 = vld [vmem:[#allocation2 + $0x88] sm:$0xff]
    %v416 = vld [vmem:[#allocation2 + $0x90] sm:$0xff]
    %v417 = vld [vmem:[#allocation2 + $0x98] sm:$0xff]
    %v418 = vld [vmem:[#allocation2 + $0xa0] sm:$0xff]
    %v419 = vld [vmem:[#allocation2 + $0xa8] sm:$0xff]
    %v420 = vld [vmem:[#allocation2 + $0xb0] sm:$0xff]
    %v421 = vld [vmem:[#allocation2 + $0xb8] sm:$0xff]
    %v422 = vld [vmem:[#allocation2 + $0xc0] sm:$0xff]
    %v423 = vld [vmem:[%s3] sm:$0x1]
    %v425 = vperm.slane %v423, 0
    %v452 = vunpack.c.l.b16 %v398
    %v453 = vunpack.c.h.b16 %v398
    %v454 = vunpack.c.l.b16 %v399
    %v455 = vunpack.c.h.b16 %v399
    %v456 = vunpack.c.l.b16 %v400
    %v457 = vunpack.c.h.b16 %v400
    %v458 = vunpack.c.l.b16 %v401
    %v459 = vunpack.c.h.b16 %v401
    %v460 = vunpack.c.l.b16 %v402
    %v461 = vunpack.c.h.b16 %v402
    %v462 = vunpack.c.l.b16 %v403
    %v463 = vunpack.c.h.b16 %v403
    %v464 = vunpack.c.l.b16 %v404
    %v465 = vunpack.c.h.b16 %v404
    %v466 = vunpack.c.l.b16 %v405
    %v467 = vunpack.c.h.b16 %v405
    %v468 = vunpack.c.l.b16 %v406
    %v469 = vunpack.c.h.b16 %v406
    %v470 = vunpack.c.l.b16 %v407
    %v471 = vunpack.c.h.b16 %v407
    %v472 = vunpack.c.l.b16 %v408
    %v473 = vunpack.c.h.b16 %v408
    %v474 = vunpack.c.l.b16 %v409
    %v475 = vunpack.c.h.b16 %v409
    %v476 = vunpack.c.l.b16 %v410
    %v477 = vunpack.c.h.b16 %v410
    %v478 = vunpack.c.l.b16 %v411
    %v479 = vunpack.c.h.b16 %v411
    %v480 = vunpack.c.l.b16 %v412
    %v481 = vunpack.c.h.b16 %v412
    %v482 = vunpack.c.l.b16 %v413
    %v483 = vunpack.c.h.b16 %v413
    %v484 = vunpack.c.l.b16 %v414
    %v485 = vunpack.c.h.b16 %v414
    %v486 = vunpack.c.l.b16 %v415
    %v487 = vunpack.c.h.b16 %v415
    %v488 = vunpack.c.l.b16 %v416
    %v489 = vunpack.c.h.b16 %v416
    %v490 = vunpack.c.l.b16 %v417
    %v491 = vunpack.c.h.b16 %v417
    %v492 = vunpack.c.l.b16 %v418
    %v493 = vunpack.c.h.b16 %v418
    %v494 = vunpack.c.l.b16 %v419
    %v495 = vunpack.c.h.b16 %v419
    %v496 = vunpack.c.l.b16 %v420
    %v497 = vunpack.c.h.b16 %v420
    %v498 = vunpack.c.l.b16 %v421
    %v499 = vunpack.c.h.b16 %v421
    %v500 = vunpack.c.l.b16 %v422
    %v501 = vunpack.c.h.b16 %v422
    %v502 = vpack.c.b16 %v454, %v452
    %v503 = vpack.c.b16 %v455, %v453
    %v504 = vpack.c.b16 %v458, %v456
    %v505 = vpack.c.b16 %v459, %v457
    %v506 = vpack.c.b16 %v462, %v460
    %v507 = vpack.c.b16 %v463, %v461
    %v508 = vpack.c.b16 %v466, %v464
    %v509 = vpack.c.b16 %v467, %v465
    %v510 = vpack.c.b16 %v470, %v468
    %v511 = vpack.c.b16 %v471, %v469
    %v512 = vpack.c.b16 %v474, %v472
    %v513 = vpack.c.b16 %v475, %v473
    %v514 = vpack.c.b16 %v478, %v476
    %v515 = vpack.c.b16 %v479, %v477
    %v516 = vpack.c.b16 %v482, %v480
    %v517 = vpack.c.b16 %v483, %v481
    %v518 = vpack.c.b16 %v486, %v484
    %v519 = vpack.c.b16 %v487, %v485
    %v520 = vpack.c.b16 %v490, %v488
    %v521 = vpack.c.b16 %v491, %v489
    %v522 = vpack.c.b16 %v494, %v492
    %v523 = vpack.c.b16 %v495, %v493
    %v524 = vpack.c.b16 %v498, %v496
    %v525 = vpack.c.b16 %v499, %v497
    %v526 = vpack.c.b16 %v500, %v500
    %v527 = vpack.c.b16 %v501, %v501
    %vm541 = vcmask 588800
    %v543 = vsel %vm541, %v503, 0
    %v546 = vsel %vm541, %v505, 0
    %v549 = vsel %vm541, %v507, 0
    %v552 = vsel %vm541, %v509, 0
    %v555 = vsel %vm541, %v511, 0
    %v558 = vsel %vm541, %v513, 0
    %v561 = vsel %vm541, %v515, 0
    %v564 = vsel %vm541, %v517, 0
    %v567 = vsel %vm541, %v519, 0
    %v570 = vsel %vm541, %v521, 0
    %v573 = vsel %vm541, %v523, 0
    %v576 = vsel %vm541, %v525, 0
    %v579 = vsel %vm541, %v527, 0
    %vm581 = vcmask 1043456
    %v583 = vsel %vm581, %v397, 0
    %585 = vmatpush.bf16.msra.mxu0 %v392
    %586 = vmatpush.bf16.msra.mxu0 %v391
    %587 = vmatpush.bf16.msra.mxu0 %v390
    %588 = vmatpush.bf16.msra.mxu0 %v389
    %589 = vmatpush.bf16.msra.mxu0 %v388
    %590 = vmatpush.bf16.msra.mxu0 %v387
    %591 = vmatpush.bf16.msra.mxu0 %v386
    %592 = vmatpush.bf16.msra.mxu0 %v385
    %593 = vmatmul.bf16.gmra.mxu0 %v502
    %v594 = vpop.f32.mrf.mxu0
    %v595 = vadd.f32 %v425, %v594
    %v596 = vpop.f32.mrf.mxu0
    %v597 = vadd.f32 %v425, %v596
    %598 = vmatmul.bf16.gmra.mxu0 %v504
    %v599 = vpop.f32.mrf.mxu0
    %v600 = vadd.f32 %v425, %v599
    %v601 = vpop.f32.mrf.mxu0
    %v602 = vadd.f32 %v425, %v601
    %603 = vmatmul.bf16.gmra.mxu0 %v506
    %v604 = vpop.f32.mrf.mxu0
    %v605 = vadd.f32 %v425, %v604
    %v606 = vpop.f32.mrf.mxu0
    %v607 = vadd.f32 %v425, %v606
    %608 = vmatmul.bf16.gmra.mxu0 %v508
    %v609 = vpop.f32.mrf.mxu0
    %v610 = vadd.f32 %v425, %v609
    %v611 = vpop.f32.mrf.mxu0
    %v612 = vadd.f32 %v425, %v611
    %613 = vmatmul.bf16.gmra.mxu0 %v510
    %v614 = vpop.f32.mrf.mxu0
    %v615 = vadd.f32 %v425, %v614
    %v616 = vpop.f32.mrf.mxu0
    %v617 = vadd.f32 %v425, %v616
    %618 = vmatmul.bf16.gmra.mxu0 %v512
    %v619 = vpop.f32.mrf.mxu0
    %v620 = vadd.f32 %v425, %v619
    %v621 = vpop.f32.mrf.mxu0
    %v622 = vadd.f32 %v425, %v621
    %623 = vmatmul.bf16.gmra.mxu0 %v514
    %v624 = vpop.f32.mrf.mxu0
    %v625 = vadd.f32 %v425, %v624
    %v626 = vpop.f32.mrf.mxu0
    %v627 = vadd.f32 %v425, %v626
    %628 = vmatmul.bf16.gmra.mxu0 %v516
    %v629 = vpop.f32.mrf.mxu0
    %v630 = vadd.f32 %v425, %v629
    %v631 = vpop.f32.mrf.mxu0
    %v632 = vadd.f32 %v425, %v631
    %633 = vmatmul.bf16.gmra.mxu0 %v518
    %v634 = vpop.f32.mrf.mxu0
    %v635 = vadd.f32 %v425, %v634
    %v636 = vpop.f32.mrf.mxu0
    %v637 = vadd.f32 %v425, %v636
    %638 = vmatmul.bf16.gmra.mxu0 %v520
    %v639 = vpop.f32.mrf.mxu0
    %v640 = vadd.f32 %v425, %v639
    %v641 = vpop.f32.mrf.mxu0
    %v642 = vadd.f32 %v425, %v641
    %643 = vmatmul.bf16.gmra.mxu0 %v522
    %v644 = vpop.f32.mrf.mxu0
    %v645 = vadd.f32 %v425, %v644
    %v646 = vpop.f32.mrf.mxu0
    %v647 = vadd.f32 %v425, %v646
    %648 = vmatmul.bf16.gmra.mxu0 %v524
    %v649 = vpop.f32.mrf.mxu0
    %v650 = vadd.f32 %v425, %v649
    %v651 = vpop.f32.mrf.mxu0
    %v652 = vadd.f32 %v425, %v651
    %653 = vmatmul.bf16.gmra.mxu0 %v526
    %v654 = vpop.f32.mrf.mxu0
    %v655 = vadd.f32 %v425, %v654
    %v656 = vpop.f32.mrf.mxu0
    %657 = vdwg.mxu0
    %658 = vmatpush.bf16.msra.mxu0 0
    %659 = vmatpush.bf16.msra.mxu0 0
    %660 = vmatpush.bf16.msra.mxu0 0
    %661 = vmatpush.bf16.msra.mxu0 %v583
    %662 = vmatpush.bf16.msra.mxu0 %v396
    %663 = vmatpush.bf16.msra.mxu0 %v395
    %664 = vmatpush.bf16.msra.mxu0 %v394
    %665 = vmatpush.bf16.msra.mxu0 %v393
    %666 = vmatmul.bf16.gmra.mxu0 %v543
    %v667 = vpop.f32.mrf.mxu0
    %v668 = vadd.f32 %v595, %v667
    %v669 = vpop.f32.mrf.mxu0
    %v670 = vadd.f32 %v597, %v669
    %671 = vmatmul.bf16.gmra.mxu0 %v546
    %v672 = vpop.f32.mrf.mxu0
    %v673 = vadd.f32 %v600, %v672
    %v674 = vpop.f32.mrf.mxu0
    %v675 = vadd.f32 %v602, %v674
    %676 = vmatmul.bf16.gmra.mxu0 %v549
    %v677 = vpop.f32.mrf.mxu0
    %v678 = vadd.f32 %v605, %v677
    %v679 = vpop.f32.mrf.mxu0
    %v680 = vadd.f32 %v607, %v679
    %681 = vmatmul.bf16.gmra.mxu0 %v552
    %v682 = vpop.f32.mrf.mxu0
    %v683 = vadd.f32 %v610, %v682
    %v684 = vpop.f32.mrf.mxu0
    %v685 = vadd.f32 %v612, %v684
    %686 = vmatmul.bf16.gmra.mxu0 %v555
    %v687 = vpop.f32.mrf.mxu0
    %v688 = vadd.f32 %v615, %v687
    %v689 = vpop.f32.mrf.mxu0
    %v690 = vadd.f32 %v617, %v689
    %691 = vmatmul.bf16.gmra.mxu0 %v558
    %v692 = vpop.f32.mrf.mxu0
    %v693 = vadd.f32 %v620, %v692
    %v694 = vpop.f32.mrf.mxu0
    %v695 = vadd.f32 %v622, %v694
    %696 = vmatmul.bf16.gmra.mxu0 %v561
    %v697 = vpop.f32.mrf.mxu0
    %v698 = vadd.f32 %v625, %v697
    %v699 = vpop.f32.mrf.mxu0
    %v700 = vadd.f32 %v627, %v699
    %701 = vmatmul.bf16.gmra.mxu0 %v564
    %v702 = vpop.f32.mrf.mxu0
    %v703 = vadd.f32 %v630, %v702
    %v704 = vpop.f32.mrf.mxu0
    %v705 = vadd.f32 %v632, %v704
    %706 = vmatmul.bf16.gmra.mxu0 %v567
    %v707 = vpop.f32.mrf.mxu0
    %v708 = vadd.f32 %v635, %v707
    %v709 = vpop.f32.mrf.mxu0
    %v710 = vadd.f32 %v637, %v709
    %711 = vmatmul.bf16.gmra.mxu0 %v570
    %v712 = vpop.f32.mrf.mxu0
    %v713 = vadd.f32 %v640, %v712
    %v714 = vpop.f32.mrf.mxu0
    %v715 = vadd.f32 %v642, %v714
    %716 = vmatmul.bf16.gmra.mxu0 %v573
    %v717 = vpop.f32.mrf.mxu0
    %v718 = vadd.f32 %v645, %v717
    %v719 = vpop.f32.mrf.mxu0
    %v720 = vadd.f32 %v647, %v719
    %721 = vmatmul.bf16.gmra.mxu0 %v576
    %v722 = vpop.f32.mrf.mxu0
    %v723 = vadd.f32 %v650, %v722
    %v724 = vpop.f32.mrf.mxu0
    %v725 = vadd.f32 %v652, %v724
    %726 = vmatmul.bf16.gmra.mxu0 %v579
    %v727 = vpop.f32.mrf.mxu0
    %v728 = vadd.f32 %v655, %v727
    %v729 = vpop.f32.mrf.mxu0
    %730 = vdwg.mxu0
    %v731 = vmax.f32 %v668, 0.0
    %v732 = vmax.f32 %v670, 0.0
    %v733 = vmax.f32 %v673, 0.0
    %v734 = vmax.f32 %v675, 0.0
    %v735 = vmax.f32 %v678, 0.0
    %v736 = vmax.f32 %v680, 0.0
    %v737 = vmax.f32 %v683, 0.0
    %v738 = vmax.f32 %v685, 0.0
    %v739 = vmax.f32 %v688, 0.0
    %v740 = vmax.f32 %v690, 0.0
    %v741 = vmax.f32 %v693, 0.0
    %v742 = vmax.f32 %v695, 0.0
    %v743 = vmax.f32 %v698, 0.0
    %v744 = vmax.f32 %v700, 0.0
    %v745 = vmax.f32 %v703, 0.0
    %v746 = vmax.f32 %v705, 0.0
    %v747 = vmax.f32 %v708, 0.0
    %v748 = vmax.f32 %v710, 0.0
    %v749 = vmax.f32 %v713, 0.0
    %v750 = vmax.f32 %v715, 0.0
    %v751 = vmax.f32 %v718, 0.0
    %v752 = vmax.f32 %v720, 0.0
    %v753 = vmax.f32 %v723, 0.0
    %v754 = vmax.f32 %v725, 0.0
    %v755 = vmax.f32 %v728, 0.0
    %v756 = vpack.c.bf16 %v732, %v731
    %v757 = vpack.c.bf16 %v734, %v733
    %v758 = vpack.c.bf16 %v736, %v735
    %v759 = vpack.c.bf16 %v738, %v737
    %v760 = vpack.c.bf16 %v740, %v739
    %v761 = vpack.c.bf16 %v742, %v741
    %v762 = vpack.c.bf16 %v744, %v743
    %v763 = vpack.c.bf16 %v746, %v745
    %v764 = vpack.c.bf16 %v748, %v747
    %v765 = vpack.c.bf16 %v750, %v749
    %v766 = vpack.c.bf16 %v752, %v751
    %v767 = vpack.c.bf16 %v754, %v753
    %v768 = vpack.c.bf16 %v755, %v755
    %v769 = vld [vmem:[#allocation8] sm:$0xf]
    %v770 = vld [vmem:[#allocation8 + $0x4] sm:$0xf]
    %v771 = vld [vmem:[#allocation8 + $0x8] sm:$0xf]
    %v772 = vld [vmem:[#allocation8 + $0xc] sm:$0xf]
    %v773 = vld [vmem:[#allocation8 + $0x10] sm:$0xf]
    %v774 = vld [vmem:[#allocation8 + $0x14] sm:$0xf]
    %v775 = vld [vmem:[#allocation8 + $0x18] sm:$0xf]
    %v776 = vld [vmem:[#allocation8 + $0x1c] sm:$0xf]
    %v777 = vld [vmem:[#allocation8 + $0x20] sm:$0xf]
    %v778 = vld [vmem:[#allocation8 + $0x24] sm:$0xf]
    %v779 = vld [vmem:[#allocation8 + $0x28] sm:$0xf]
    %v780 = vld [vmem:[#allocation8 + $0x2c] sm:$0xf]
    %v781 = vld [vmem:[#allocation8 + $0x30] sm:$0xf]
    %v782 = vld [vmem:[#allocation8 + $0x34] sm:$0xf]
    %v783 = vld [vmem:[#allocation8 + $0x38] sm:$0xf]
    %v784 = vld [vmem:[#allocation8 + $0x3c] sm:$0xf]
    %v801 = vunpack.c.l.b16 %v769
    %v802 = vunpack.c.l.b16 %v770
    %v803 = vunpack.c.l.b16 %v771
    %v804 = vunpack.c.l.b16 %v772
    %v805 = vunpack.c.l.b16 %v773
    %v806 = vunpack.c.l.b16 %v774
    %v807 = vunpack.c.l.b16 %v775
    %v808 = vunpack.c.l.b16 %v776
    %v809 = vunpack.c.l.b16 %v777
    %v810 = vunpack.c.l.b16 %v778
    %v811 = vunpack.c.l.b16 %v779
    %v812 = vunpack.c.l.b16 %v780
    %v813 = vunpack.c.l.b16 %v781
    %v814 = vunpack.c.l.b16 %v782
    %v815 = vunpack.c.l.b16 %v783
    %v816 = vunpack.c.l.b16 %v784
    %v817 = vpack.c.b16 %v802, %v801
    %v818 = vpack.c.b16 %v804, %v803
    %v819 = vpack.c.b16 %v806, %v805
    %v820 = vpack.c.b16 %v808, %v807
    %v821 = vpack.c.b16 %v810, %v809
    %v822 = vpack.c.b16 %v812, %v811
    %v823 = vpack.c.b16 %v814, %v813
    %v824 = vpack.c.b16 %v816, %v815
    %833 = vmatpush.bf16.msra.mxu0 %v824
    %834 = vmatpush.bf16.msra.mxu0 %v823
    %835 = vmatpush.bf16.msra.mxu0 %v822
    %836 = vmatpush.bf16.msra.mxu0 %v821
    %837 = vmatpush.bf16.msra.mxu0 %v820
    %838 = vmatpush.bf16.msra.mxu0 %v819
    %839 = vmatpush.bf16.msra.mxu0 %v818
    %840 = vmatpush.bf16.msra.mxu0 %v817
    %841 = vmatmul.bf16.gmra.mxu0 %v756
    %v842 = vpop.f32.mrf.mxu0
    %v843 = vadd.f32 0.0, %v842
    %v844 = vpop.f32.mrf.mxu0
    %v845 = vadd.f32 0.0, %v844
    %846 = vmatmul.bf16.gmra.mxu0 %v757
    %v847 = vpop.f32.mrf.mxu0
    %v848 = vadd.f32 0.0, %v847
    %v849 = vpop.f32.mrf.mxu0
    %v850 = vadd.f32 0.0, %v849
    %851 = vmatmul.bf16.gmra.mxu0 %v758
    %v852 = vpop.f32.mrf.mxu0
    %v853 = vadd.f32 0.0, %v852
    %v854 = vpop.f32.mrf.mxu0
    %v855 = vadd.f32 0.0, %v854
    %856 = vmatmul.bf16.gmra.mxu0 %v759
    %v857 = vpop.f32.mrf.mxu0
    %v858 = vadd.f32 0.0, %v857
    %v859 = vpop.f32.mrf.mxu0
    %v860 = vadd.f32 0.0, %v859
    %861 = vmatmul.bf16.gmra.mxu0 %v760
    %v862 = vpop.f32.mrf.mxu0
    %v863 = vadd.f32 0.0, %v862
    %v864 = vpop.f32.mrf.mxu0
    %v865 = vadd.f32 0.0, %v864
    %866 = vmatmul.bf16.gmra.mxu0 %v761
    %v867 = vpop.f32.mrf.mxu0
    %v868 = vadd.f32 0.0, %v867
    %v869 = vpop.f32.mrf.mxu0
    %v870 = vadd.f32 0.0, %v869
    %871 = vmatmul.bf16.gmra.mxu0 %v762
    %v872 = vpop.f32.mrf.mxu0
    %v873 = vadd.f32 0.0, %v872
    %v874 = vpop.f32.mrf.mxu0
    %v875 = vadd.f32 0.0, %v874
    %876 = vmatmul.bf16.gmra.mxu0 %v763
    %v877 = vpop.f32.mrf.mxu0
    %v878 = vadd.f32 0.0, %v877
    %v879 = vpop.f32.mrf.mxu0
    %v880 = vadd.f32 0.0, %v879
    %881 = vmatmul.bf16.gmra.mxu0 %v764
    %v882 = vpop.f32.mrf.mxu0
    %v883 = vadd.f32 0.0, %v882
    %v884 = vpop.f32.mrf.mxu0
    %v885 = vadd.f32 0.0, %v884
    %886 = vmatmul.bf16.gmra.mxu0 %v765
    %v887 = vpop.f32.mrf.mxu0
    %v888 = vadd.f32 0.0, %v887
    %v889 = vpop.f32.mrf.mxu0
    %v890 = vadd.f32 0.0, %v889
    %891 = vmatmul.bf16.gmra.mxu0 %v766
    %v892 = vpop.f32.mrf.mxu0
    %v893 = vadd.f32 0.0, %v892
    %v894 = vpop.f32.mrf.mxu0
    %v895 = vadd.f32 0.0, %v894
    %896 = vmatmul.bf16.gmra.mxu0 %v767
    %v897 = vpop.f32.mrf.mxu0
    %v898 = vadd.f32 0.0, %v897
    %v899 = vpop.f32.mrf.mxu0
    %v900 = vadd.f32 0.0, %v899
    %901 = vmatmul.bf16.gmra.mxu0 %v768
    %v902 = vpop.f32.mrf.mxu0
    %v903 = vadd.f32 0.0, %v902
    %v904 = vpop.f32.mrf.mxu0
    %905 = vdwg.mxu0
    %v906 = vpack.c.bf16 %v845, %v843
    %v907 = vpack.c.bf16 %v850, %v848
    %v908 = vpack.c.bf16 %v855, %v853
    %v909 = vpack.c.bf16 %v860, %v858
    %v910 = vpack.c.bf16 %v865, %v863
    %v911 = vpack.c.bf16 %v870, %v868
    %v912 = vpack.c.bf16 %v875, %v873
    %v913 = vpack.c.bf16 %v880, %v878
    %v914 = vpack.c.bf16 %v885, %v883
    %v915 = vpack.c.bf16 %v890, %v888
    %v916 = vpack.c.bf16 %v895, %v893
    %v917 = vpack.c.bf16 %v900, %v898
    %v918 = vpack.c.bf16 %v903, %v903
    %v919 = vld [vmem:[%s5] sm:$0x1]
    %v921 = vperm.slane %v919, 0
    %v924 = vsel %vm581, %v918, 0
    %926 = vmatpush.bf16.msra.mxu0 %v913
    %927 = vmatpush.bf16.msra.mxu0 %v912
    %928 = vmatpush.bf16.msra.mxu0 %v911
    %929 = vmatpush.bf16.msra.mxu0 %v910
    %930 = vmatpush.bf16.msra.mxu0 %v909
    %931 = vmatpush.bf16.msra.mxu0 %v908
    %932 = vmatpush.bf16.msra.mxu0 %v907
    %933 = vmatpush.bf16.msra.mxu0 %v906
    %934 = vmatmul.bf16.gmra.mxu0 %v502
    %v935 = vpop.f32.mrf.mxu0
    %v936 = vadd.f32 %v921, %v935
    %v937 = vpop.f32.mrf.mxu0
    %v938 = vadd.f32 %v921, %v937
    %939 = vmatmul.bf16.gmra.mxu0 %v504
    %v940 = vpop.f32.mrf.mxu0
    %v941 = vadd.f32 %v921, %v940
    %v942 = vpop.f32.mrf.mxu0
    %v943 = vadd.f32 %v921, %v942
    %944 = vmatmul.bf16.gmra.mxu0 %v506
    %v945 = vpop.f32.mrf.mxu0
    %v946 = vadd.f32 %v921, %v945
    %v947 = vpop.f32.mrf.mxu0
    %v948 = vadd.f32 %v921, %v947
    %949 = vmatmul.bf16.gmra.mxu0 %v508
    %v950 = vpop.f32.mrf.mxu0
    %v951 = vadd.f32 %v921, %v950
    %v952 = vpop.f32.mrf.mxu0
    %v953 = vadd.f32 %v921, %v952
    %954 = vmatmul.bf16.gmra.mxu0 %v510
    %v955 = vpop.f32.mrf.mxu0
    %v956 = vadd.f32 %v921, %v955
    %v957 = vpop.f32.mrf.mxu0
    %v958 = vadd.f32 %v921, %v957
    %959 = vmatmul.bf16.gmra.mxu0 %v512
    %v960 = vpop.f32.mrf.mxu0
    %v961 = vadd.f32 %v921, %v960
    %v962 = vpop.f32.mrf.mxu0
    %v963 = vadd.f32 %v921, %v962
    %964 = vmatmul.bf16.gmra.mxu0 %v514
    %v965 = vpop.f32.mrf.mxu0
    %v966 = vadd.f32 %v921, %v965
    %v967 = vpop.f32.mrf.mxu0
    %v968 = vadd.f32 %v921, %v967
    %969 = vmatmul.bf16.gmra.mxu0 %v516
    %v970 = vpop.f32.mrf.mxu0
    %v971 = vadd.f32 %v921, %v970
    %v972 = vpop.f32.mrf.mxu0
    %v973 = vadd.f32 %v921, %v972
    %974 = vmatmul.bf16.gmra.mxu0 %v518
    %v975 = vpop.f32.mrf.mxu0
    %v976 = vadd.f32 %v921, %v975
    %v977 = vpop.f32.mrf.mxu0
    %v978 = vadd.f32 %v921, %v977
    %979 = vmatmul.bf16.gmra.mxu0 %v520
    %v980 = vpop.f32.mrf.mxu0
    %v981 = vadd.f32 %v921, %v980
    %v982 = vpop.f32.mrf.mxu0
    %v983 = vadd.f32 %v921, %v982
    %984 = vmatmul.bf16.gmra.mxu0 %v522
    %v985 = vpop.f32.mrf.mxu0
    %v986 = vadd.f32 %v921, %v985
    %v987 = vpop.f32.mrf.mxu0
    %v988 = vadd.f32 %v921, %v987
    %989 = vmatmul.bf16.gmra.mxu0 %v524
    %v990 = vpop.f32.mrf.mxu0
    %v991 = vadd.f32 %v921, %v990
    %v992 = vpop.f32.mrf.mxu0
    %v993 = vadd.f32 %v921, %v992
    %994 = vmatmul.bf16.gmra.mxu0 %v526
    %v995 = vpop.f32.mrf.mxu0
    %v996 = vadd.f32 %v921, %v995
    %v997 = vpop.f32.mrf.mxu0
    %998 = vdwg.mxu0
    %999 = vmatpush.bf16.msra.mxu0 0
    %1000 = vmatpush.bf16.msra.mxu0 0
    %1001 = vmatpush.bf16.msra.mxu0 0
    %1002 = vmatpush.bf16.msra.mxu0 %v924
    %1003 = vmatpush.bf16.msra.mxu0 %v917
    %1004 = vmatpush.bf16.msra.mxu0 %v916
    %1005 = vmatpush.bf16.msra.mxu0 %v915
    %1006 = vmatpush.bf16.msra.mxu0 %v914
    %1007 = vmatmul.bf16.gmra.mxu0 %v543
    %v1008 = vpop.f32.mrf.mxu0
    %v1009 = vadd.f32 %v936, %v1008
    %v1010 = vpop.f32.mrf.mxu0
    %v1011 = vadd.f32 %v938, %v1010
    %1012 = vmatmul.bf16.gmra.mxu0 %v546
    %v1013 = vpop.f32.mrf.mxu0
    %v1014 = vadd.f32 %v941, %v1013
    %v1015 = vpop.f32.mrf.mxu0
    %v1016 = vadd.f32 %v943, %v1015
    %1017 = vmatmul.bf16.gmra.mxu0 %v549
    %v1018 = vpop.f32.mrf.mxu0
    %v1019 = vadd.f32 %v946, %v1018
    %v1020 = vpop.f32.mrf.mxu0
    %v1021 = vadd.f32 %v948, %v1020
    %1022 = vmatmul.bf16.gmra.mxu0 %v552
    %v1023 = vpop.f32.mrf.mxu0
    %v1024 = vadd.f32 %v951, %v1023
    %v1025 = vpop.f32.mrf.mxu0
    %v1026 = vadd.f32 %v953, %v1025
    %1027 = vmatmul.bf16.gmra.mxu0 %v555
    %v1028 = vpop.f32.mrf.mxu0
    %v1029 = vadd.f32 %v956, %v1028
    %v1030 = vpop.f32.mrf.mxu0
    %v1031 = vadd.f32 %v958, %v1030
    %1032 = vmatmul.bf16.gmra.mxu0 %v558
    %v1033 = vpop.f32.mrf.mxu0
    %v1034 = vadd.f32 %v961, %v1033
    %v1035 = vpop.f32.mrf.mxu0
    %v1036 = vadd.f32 %v963, %v1035
    %1037 = vmatmul.bf16.gmra.mxu0 %v561
    %v1038 = vpop.f32.mrf.mxu0
    %v1039 = vadd.f32 %v966, %v1038
    %v1040 = vpop.f32.mrf.mxu0
    %v1041 = vadd.f32 %v968, %v1040
    %1042 = vmatmul.bf16.gmra.mxu0 %v564
    %v1043 = vpop.f32.mrf.mxu0
    %v1044 = vadd.f32 %v971, %v1043
    %v1045 = vpop.f32.mrf.mxu0
    %v1046 = vadd.f32 %v973, %v1045
    %1047 = vmatmul.bf16.gmra.mxu0 %v567
    %v1048 = vpop.f32.mrf.mxu0
    %v1049 = vadd.f32 %v976, %v1048
    %v1050 = vpop.f32.mrf.mxu0
    %v1051 = vadd.f32 %v978, %v1050
    %1052 = vmatmul.bf16.gmra.mxu0 %v570
    %v1053 = vpop.f32.mrf.mxu0
    %v1054 = vadd.f32 %v981, %v1053
    %v1055 = vpop.f32.mrf.mxu0
    %v1056 = vadd.f32 %v983, %v1055
    %1057 = vmatmul.bf16.gmra.mxu0 %v573
    %v1058 = vpop.f32.mrf.mxu0
    %v1059 = vadd.f32 %v986, %v1058
    %v1060 = vpop.f32.mrf.mxu0
    %v1061 = vadd.f32 %v988, %v1060
    %1062 = vmatmul.bf16.gmra.mxu0 %v576
    %v1063 = vpop.f32.mrf.mxu0
    %v1064 = vadd.f32 %v991, %v1063
    %v1065 = vpop.f32.mrf.mxu0
    %v1066 = vadd.f32 %v993, %v1065
    %1067 = vmatmul.bf16.gmra.mxu0 %v579
    %v1068 = vpop.f32.mrf.mxu0
    %v1069 = vadd.f32 %v996, %v1068
    %v1070 = vpop.f32.mrf.mxu0
    %1071 = vdwg.mxu0
    %v1072 = vmax.f32 %v1009, 0.0
    %v1073 = vmax.f32 %v1011, 0.0
    %v1074 = vmax.f32 %v1014, 0.0
    %v1075 = vmax.f32 %v1016, 0.0
    %v1076 = vmax.f32 %v1019, 0.0
    %v1077 = vmax.f32 %v1021, 0.0
    %v1078 = vmax.f32 %v1024, 0.0
    %v1079 = vmax.f32 %v1026, 0.0
    %v1080 = vmax.f32 %v1029, 0.0
    %v1081 = vmax.f32 %v1031, 0.0
    %v1082 = vmax.f32 %v1034, 0.0
    %v1083 = vmax.f32 %v1036, 0.0
    %v1084 = vmax.f32 %v1039, 0.0
    %v1085 = vmax.f32 %v1041, 0.0
    %v1086 = vmax.f32 %v1044, 0.0
    %v1087 = vmax.f32 %v1046, 0.0
    %v1088 = vmax.f32 %v1049, 0.0
    %v1089 = vmax.f32 %v1051, 0.0
    %v1090 = vmax.f32 %v1054, 0.0
    %v1091 = vmax.f32 %v1056, 0.0
    %v1092 = vmax.f32 %v1059, 0.0
    %v1093 = vmax.f32 %v1061, 0.0
    %v1094 = vmax.f32 %v1064, 0.0
    %v1095 = vmax.f32 %v1066, 0.0
    %v1096 = vmax.f32 %v1069, 0.0
    %v1097 = vld [vmem:[#allocation10] sm:$0xff]
    %v1098 = vld [vmem:[#allocation10 + $0x8] sm:$0xff]
    %v1100 = vsel %vm541, %v1098, 0
    %1102 = vmatpush.msra.mxu0 %v1087
    %1103 = vmatpush.msra.mxu0 %v1086
    %1104 = vmatpush.msra.mxu0 %v1085
    %1105 = vmatpush.msra.mxu0 %v1084
    %1106 = vmatpush.msra.mxu0 %v1083
    %1107 = vmatpush.msra.mxu0 %v1082
    %1108 = vmatpush.msra.mxu0 %v1081
    %1109 = vmatpush.msra.mxu0 %v1080
    %1110 = vmatpush.msra.mxu0 %v1079
    %1111 = vmatpush.msra.mxu0 %v1078
    %1112 = vmatpush.msra.mxu0 %v1077
    %1113 = vmatpush.msra.mxu0 %v1076
    %1114 = vmatpush.msra.mxu0 %v1075
    %1115 = vmatpush.msra.mxu0 %v1074
    %1116 = vmatpush.msra.mxu0 %v1073
    %1117 = vmatpush.msra.mxu0 %v1072
    %1118 = vmatmul.f32.gmra.mxu0 %v1097
    %v1119 = vpop.f32.mrf.mxu0
    %v1120 = vadd.f32 0.0, %v1119
    %1121 = vdwg.mxu0
    %1122 = vmatpush.msra.mxu0 0.0
    %1123 = vmatpush.msra.mxu0 0.0
    %1124 = vmatpush.msra.mxu0 0.0
    %1125 = vmatpush.msra.mxu0 0.0
    %1126 = vmatpush.msra.mxu0 0.0
    %1127 = vmatpush.msra.mxu0 0.0
    %1128 = vmatpush.msra.mxu0 0.0
    %1129 = vmatpush.msra.mxu0 %v1096
    %1130 = vmatpush.msra.mxu0 %v1095
    %1131 = vmatpush.msra.mxu0 %v1094
    %1132 = vmatpush.msra.mxu0 %v1093
    %1133 = vmatpush.msra.mxu0 %v1092
    %1134 = vmatpush.msra.mxu0 %v1091
    %1135 = vmatpush.msra.mxu0 %v1090
    %1136 = vmatpush.msra.mxu0 %v1089
    %1137 = vmatpush.msra.mxu0 %v1088
    %1138 = vmatmul.f32.gmra.mxu0 %v1100
    %v1139 = vpop.f32.mrf.mxu0
    %v1140 = vadd.f32 %v1120, %v1139
    %1141 = vdwg.mxu0
    %v1142 = vld [vmem:[#allocation11] sm:$0xff]
    %v1143 = vld [vmem:[#allocation11 + $0x8] sm:$0xff]
    %v1144 = vld [vmem:[#allocation11 + $0x10] sm:$0xff]
    %v1145 = vld [vmem:[#allocation11 + $0x18] sm:$0xff]
    %v1146 = vld [vmem:[#allocation11 + $0x20] sm:$0xff]
    %v1147 = vld [vmem:[#allocation11 + $0x28] sm:$0xff]
    %v1148 = vld [vmem:[#allocation11 + $0x30] sm:$0xff]
    %v1149 = vld [vmem:[#allocation11 + $0x38] sm:$0xff]
    %v1150 = vld [vmem:[#allocation11 + $0x40] sm:$0xff]
    %v1151 = vld [vmem:[#allocation11 + $0x48] sm:$0xff]
    %v1152 = vld [vmem:[#allocation11 + $0x50] sm:$0xff]
    %v1153 = vld [vmem:[#allocation11 + $0x58] sm:$0xff]
    %v1154 = vld [vmem:[#allocation11 + $0x60] sm:$0xff]
    %v1155 = vld [vmem:[#allocation11 + $0x68] sm:$0xff]
    %v1156 = vld [vmem:[#allocation11 + $0x70] sm:$0xff]
    %v1157 = vld [vmem:[#allocation11 + $0x78] sm:$0xff]
    %v1158 = vld [vmem:[%s8] sm:$0x1]
    %v1160 = vperm.slane %v1158, 0
    %1162 = vmatpush.msra.mxu0 %v1157
    %1163 = vmatpush.msra.mxu0 %v1156
    %1164 = vmatpush.msra.mxu0 %v1155
    %1165 = vmatpush.msra.mxu0 %v1154
    %1166 = vmatpush.msra.mxu0 %v1153
    %1167 = vmatpush.msra.mxu0 %v1152
    %1168 = vmatpush.msra.mxu0 %v1151
    %1169 = vmatpush.msra.mxu0 %v1150
    %1170 = vmatpush.msra.mxu0 %v1149
    %1171 = vmatpush.msra.mxu0 %v1148
    %1172 = vmatpush.msra.mxu0 %v1147
    %1173 = vmatpush.msra.mxu0 %v1146
    %1174 = vmatpush.msra.mxu0 %v1145
    %1175 = vmatpush.msra.mxu0 %v1144
    %1176 = vmatpush.msra.mxu0 %v1143
    %1177 = vmatpush.msra.mxu0 %v1142
    %1178 = vmatmul.f32.gmra.mxu0 %v1140
    %v1179 = vpop.f32.mrf.mxu0
    %v1180 = vadd.f32 %v1160, %v1179
    %1181 = vdwg.mxu0
    %v1182 = vmax.f32 %v1180, 0.0
    %v1183 = vld [vmem:[#allocation13] sm:$0xff]
    %v1184 = vld [vmem:[#allocation13 + $0x8] sm:$0xff]
    %v1185 = vld [vmem:[#allocation13 + $0x10] sm:$0xff]
    %v1186 = vld [vmem:[#allocation13 + $0x18] sm:$0xff]
    %v1187 = vld [vmem:[#allocation13 + $0x20] sm:$0xff]
    %v1188 = vld [vmem:[#allocation13 + $0x28] sm:$0xff]
    %v1189 = vld [vmem:[#allocation13 + $0x30] sm:$0xff]
    %v1190 = vld [vmem:[#allocation13 + $0x38] sm:$0xff]
    %v1191 = vld [vmem:[#allocation13 + $0x40] sm:$0xff]
    %v1192 = vld [vmem:[#allocation13 + $0x48] sm:$0xff]
    %v1193 = vld [vmem:[#allocation13 + $0x50] sm:$0xff]
    %v1194 = vld [vmem:[#allocation13 + $0x58] sm:$0xff]
    %v1195 = vld [vmem:[#allocation13 + $0x60] sm:$0xff]
    %v1196 = vld [vmem:[#allocation13 + $0x68] sm:$0xff]
    %v1197 = vld [vmem:[#allocation13 + $0x70] sm:$0xff]
    %v1198 = vld [vmem:[#allocation13 + $0x78] sm:$0xff]
    %v1199 = vld [vmem:[%s10] sm:$0x1]
    %v1201 = vperm.slane %v1199, 0
    %1203 = vmatpush.msra.mxu0 %v1198
    %1204 = vmatpush.msra.mxu0 %v1197
    %1205 = vmatpush.msra.mxu0 %v1196
    %1206 = vmatpush.msra.mxu0 %v1195
    %1207 = vmatpush.msra.mxu0 %v1194
    %1208 = vmatpush.msra.mxu0 %v1193
    %1209 = vmatpush.msra.mxu0 %v1192
    %1210 = vmatpush.msra.mxu0 %v1191
    %1211 = vmatpush.msra.mxu0 %v1190
    %1212 = vmatpush.msra.mxu0 %v1189
    %1213 = vmatpush.msra.mxu0 %v1188
    %1214 = vmatpush.msra.mxu0 %v1187
    %1215 = vmatpush.msra.mxu0 %v1186
    %1216 = vmatpush.msra.mxu0 %v1185
    %1217 = vmatpush.msra.mxu0 %v1184
    %1218 = vmatpush.msra.mxu0 %v1183
    %1219 = vmatmul.f32.gmra.mxu0 %v1182
    %v1220 = vpop.f32.mrf.mxu0
    %v1221 = vadd.f32 %v1201, %v1220
    %1222 = vdwg.mxu0
    %1223 = vst [vmem:[#allocation14] sm:$0xff] %v1221
    // Predicated region
    $region74: #{tpu_custom_call.1} parent=1 // pred_check
      _
    $region75: #{tpu_custom_call.1} parent=1 // pred_check_branch
      %1225 = sbr.rel (0) target = $region77
    $region76: #{tpu_custom_call.1} parent=1 // pred_region
      %1227 = vsyncadd [#allocation4], 0
      %s1229 = sshll.u32 [#allocation14], 4
      %s1230 = int_to_ptr.vmem [resolvable:$true] %s1229
      %s1231 = sshll.u32 %s11, 4
      %s1232 = int_to_ptr.hbm [resolvable:$true] %s1231
      %1234 = dma.vmem_to_hbm [thread:$0]  %s1230, 128, %s1232, [#allocation4]
    $region77: #{tpu_custom_call.1} parent=1 // pred_fallthru
      _
    // Predicated region
    $region78: #{tpu_custom_call.1} parent=1 // pred_check
      _
    $region79: #{tpu_custom_call.1} parent=1 // pred_check_branch
      %1236 = sbr.rel (0) target = $region81
    $region80: #{tpu_custom_call.1} parent=1 // pred_region
      %1238 = dma.done [#allocation4], 128
    $region81: #{tpu_custom_call.1} parent=1 // pred_fallthru
      _
    %1239 = vsyncpa [#allocation3], 1
    %1240 = vsyncpa [#allocation6], 1
    %1241 = vsyncpa [#allocation9], 1
    %1242 = vsyncpa [#allocation12], 1
    %1243 = vsyncpa [#allocation4], 1

</llo_original>
